<compile_context>
chip_gen: v7x
topology: tpu7x:2x2x1
jax: 0.10.0
libtpu: 0.0.40
codegen_flags: <defaults>
</compile_context>

<pallas_src>
import math

import jax
import jax.numpy as jnp
from jax.experimental import pallas as pl
from jax.experimental.pallas import tpu as pltpu


def sage_kernel(src_ref, nbr_ref, w_self_ref, w_nbr_ref, out_ref):
    # nbr_ref:    (tm, pair*K*D) lane-dense neighbor slab (bf16)
    # w_nbr_ref:  (pair*K*D, pair*O) == blockdiag_pair(vstack([W_neigh / K] * K))
    acc = jnp.dot(nbr_ref[...], w_nbr_ref[...],
                  preferred_element_type=jnp.float32)            # (tm, pair*O)
    acc += jnp.dot(src_ref[...], w_self_ref[...],
                   preferred_element_type=jnp.float32)           # (tm, pair*O)
    out_ref[...] = jnp.maximum(acc, 0.0).astype(out_ref.dtype)


def _tpu_vmem_capacity_bytes():
    try:
        return int(pltpu.get_tpu_info().vmem_capacity_bytes)
    except Exception:
        return 64 << 20        # conservative fallback (v7x physical VMEM)


def _tensorcores_per_chip():
    try:
        kind = jax.devices()[0].device_kind.lower()
    except Exception:
        return 1
    return 2 if ("v7" in kind or "7x" in kind) else 1


def _pick_tile_rows(n_rows, bytes_per_row, weight_bytes, vmem_budget, cores,
                    max_rows=8192):
    """Node tile (in paired-row units): as big as the VMEM budget allows."""
    per_row = max(int(bytes_per_row), 1)
    avail = max(int(vmem_budget) - 2 * int(weight_bytes), 16 * per_row)
    t = min(n_rows, max_rows, avail // per_row)
    if t < n_rows:
        t = max(16, (t // 16) * 16)          # bf16 packs 2 rows per sublane
    if cores >= 2 and n_rows >= 32:
        # Size the grid to split evenly across TensorCores (CORE_PARALLEL).
        steps = pl.cdiv(n_rows, t)
        steps = ((steps + cores - 1) // cores) * cores
        t = ((pl.cdiv(n_rows, steps) + 15) // 16) * 16
    return int(t)


def sage_layer(src_x, neighbors_x, w_self, w_neigh, *, tm_rows=None,
               compute_dtype=jnp.bfloat16):
    N, D = src_x.shape
    N2, K, D2 = neighbors_x.shape
    assert N2 == N and D2 == D
    O = w_self.shape[1]
    out_dtype = src_x.dtype

    # Row-pairing factor so the output row width is a lane-dense 128.
    pair = 1
    if O < 128 and 128 % O == 0 and N % (128 // O) == 0:
        pair = 128 // O
    Np = N // pair

    # bf16 inputs, lane-dense row-paired slabs (contiguous reshapes -> free).
    src_p = src_x.astype(compute_dtype).reshape(Np, pair * D)
    nbr_p = neighbors_x.astype(compute_dtype).reshape(Np, pair * K * D)

    # Fold 1/K of the mean into the neighbor weight, replicate K times along
    # the contraction dim, then block-diagonalize both weights for pairing:
    #   paired_row @ kron(I_pair, W) == [row_0 @ W, ..., row_{pair-1} @ W]
    w_nbr_rep = jnp.tile(w_neigh * (1.0 / K), (K, 1))               # (K*D, O)
    eye_p = jnp.eye(pair, dtype=w_self.dtype)
    w_self_bd = jnp.kron(eye_p, w_self).astype(compute_dtype)       # (pair*D,   pair*O)
    w_nbr_bd = jnp.kron(eye_p, w_nbr_rep).astype(compute_dtype)     # (pair*K*D, pair*O)

    in_bytes = jnp.dtype(compute_dtype).itemsize
    out_bytes = jnp.dtype(out_dtype).itemsize
    weight_bytes = (w_self_bd.size + w_nbr_bd.size) * in_bytes

    vmem_cap = _tpu_vmem_capacity_bytes()
    cores = _tensorcores_per_chip()
    if tm_rows is None:
        # double-buffered src + neighbor + output tiles, per paired row
        bytes_per_row = 2 * (pair * (K + 1) * D * in_bytes + pair * O * out_bytes)
        tm_rows = _pick_tile_rows(Np, bytes_per_row, weight_bytes,
                                  int(0.70 * vmem_cap), cores)

    steps = pl.cdiv(Np, tm_rows)
    if cores >= 2 and steps % cores == 0:
        dim_sem = (pltpu.CORE_PARALLEL,)     # actually shards the grid across TCs
    else:
        dim_sem = (pltpu.ARBITRARY,)         # parallel vs arbitrary is a codegen no-op

    flops = 2 * N * (K + 1) * D * (pair * O)   # includes block-diag zero lanes
    bytes_accessed = (N * (K + 1) * D * in_bytes + N * O * out_bytes + weight_bytes)

    out_p = pl.pallas_call(
        sage_kernel,
        out_shape=jax.ShapeDtypeStruct((Np, pair * O), out_dtype),
        grid_spec=pltpu.PrefetchScalarGridSpec(
            num_scalar_prefetch=0,
            grid=(steps,),
            in_specs=[
                pl.BlockSpec((tm_rows, pair * D), lambda i: (i, 0)),       # src tile
                pl.BlockSpec((tm_rows, pair * K * D), lambda i: (i, 0)),   # neighbor slab
                pl.BlockSpec((pair * D, pair * O), lambda i: (0, 0)),      # W_self (resident)
                pl.BlockSpec((pair * K * D, pair * O), lambda i: (0, 0)),  # W_neigh rep (resident)
            ],
            out_specs=pl.BlockSpec((tm_rows, pair * O), lambda i: (i, 0)),
        ),
        compiler_params=pltpu.CompilerParams(
            dimension_semantics=dim_sem,
            vmem_limit_bytes=int(0.90 * vmem_cap),
        ),
        cost_estimate=pl.CostEstimate(
            flops=flops, transcendentals=0, bytes_accessed=bytes_accessed),
    )(src_p, nbr_p, w_self_bd, w_nbr_bd)

    # Free row-major view back to (N, O).
    return out_p.reshape(N, O)


def kaiming_uniform(key, shape, dtype=jnp.float32):
    # torch.nn.init.kaiming_uniform_ default (a=0): gain=sqrt(2),
    # bound = gain * sqrt(3 / fan_in), fan_in = shape[1] for a 2-D tensor.
    fan_in = shape[1]
    bound = math.sqrt(2.0) * math.sqrt(3.0 / fan_in)
    return jax.random.uniform(key, shape, dtype, minval=-bound, maxval=bound)


if __name__ == "__main__":
    # Small deterministic example consistent with the module's forward:
    #   src_x: (N, input_dim), neighbors_x: (N, num_neighbors, input_dim)
    N, K, D, O = 256, 8, 32, 64

    key = jax.random.PRNGKey(0)
    k_src, k_nbr, k_ws, k_wn = jax.random.split(key, 4)

    src_x = jax.random.normal(k_src, (N, D), jnp.float32)
    neighbors_x = jax.random.normal(k_nbr, (N, K, D), jnp.float32)
    w_self = kaiming_uniform(k_ws, (D, O))     # SageLayer.weight
    w_neigh = kaiming_uniform(k_wn, (D, O))    # NeighborAggregator.weight

    out = jax.block_until_ready(sage_layer(src_x, neighbors_x, w_self, w_neigh))
    assert out.shape == (N, O)

    # Reference of the forward semantics with the same bf16 input quantization
    # (math in f32, like the kernel's f32 accumulation).
    up = lambda a: a.astype(jnp.bfloat16).astype(jnp.float32)
    ref = jnp.maximum(
        up(src_x) @ up(w_self) + up(neighbors_x).mean(axis=1) @ up(w_neigh), 0.0)
    assert jnp.allclose(out, ref, atol=2e-2, rtol=2e-2)

    # Loose check against the pure-f32 reference as well.
    ref_f32 = jnp.maximum(src_x @ w_self + neighbors_x.mean(axis=1) @ w_neigh, 0.0)
    assert jnp.allclose(out, ref_f32, atol=5e-2, rtol=5e-2)

    print("KERNEL_OK")
</pallas_src>

<mosaic_0001>
module attributes {stable_mosaic.version = 11 : i64} {
  func.func @sage_kernel(%arg0: i32, %arg1: memref<128x64xbf16, #tpu.memory_space<vmem>>, %arg2: memref<128x512xbf16, #tpu.memory_space<vmem>>, %arg3: memref<64x128xbf16, #tpu.memory_space<vmem>>, %arg4: memref<512x128xbf16, #tpu.memory_space<vmem>>, %arg5: memref<128x128xf32, #tpu.memory_space<vmem>>) attributes {dimension_semantics = [#tpu.dimension_semantics<arbitrary>], iteration_bounds = array<i64: 1>, scalar_prefetch = 0 : i64, scratch_operands = 0 : i64, tpu.core_type = #tpu.core_type<tc>, window_params = [{transform_indices = @transform_0, window_bounds = array<i64: 128, 64>}, {transform_indices = @transform_1, window_bounds = array<i64: 128, 512>}, {pipeline_mode = #tpu.pipeline_mode<synchronous>, transform_indices = @transform_2, window_bounds = array<i64: 64, 128>}, {pipeline_mode = #tpu.pipeline_mode<synchronous>, transform_indices = @transform_3, window_bounds = array<i64: 512, 128>}, {transform_indices = @transform_4, window_bounds = array<i64: 128, 128>}]} {
    %c0 = arith.constant 0 : index
    %c0_0 = arith.constant 0 : index
    %0 = vector.load %arg2[%c0, %c0_0] : memref<128x512xbf16, #tpu.memory_space<vmem>>, vector<128x512xbf16>
    %c0_1 = arith.constant 0 : index
    %c0_2 = arith.constant 0 : index
    %1 = vector.load %arg4[%c0_1, %c0_2] : memref<512x128xbf16, #tpu.memory_space<vmem>>, vector<512x128xbf16>
    %cst = arith.constant dense<0.000000e+00> : vector<128x128xf32>
    %2 = tpu.matmul %0, %1, %cst {dimension_numbers = #tpu.dot_dimension_numbers<[1], [0], [0], [1], [0, 0, 1, 1], [], []>} : vector<128x512xbf16>, vector<512x128xbf16>, vector<128x128xf32> -> vector<128x128xf32>
    %c0_3 = arith.constant 0 : index
    %c0_4 = arith.constant 0 : index
    %3 = vector.load %arg1[%c0_3, %c0_4] : memref<128x64xbf16, #tpu.memory_space<vmem>>, vector<128x64xbf16>
    %c0_5 = arith.constant 0 : index
    %c0_6 = arith.constant 0 : index
    %4 = vector.load %arg3[%c0_5, %c0_6] : memref<64x128xbf16, #tpu.memory_space<vmem>>, vector<64x128xbf16>
    %cst_7 = arith.constant dense<0.000000e+00> : vector<128x128xf32>
    %5 = tpu.matmul %3, %4, %cst_7 {dimension_numbers = #tpu.dot_dimension_numbers<[1], [0], [0], [1], [0, 0, 1, 1], [], []>} : vector<128x64xbf16>, vector<64x128xbf16>, vector<128x128xf32> -> vector<128x128xf32>
    %6 = arith.addf %2, %5 : vector<128x128xf32>
    %cst_8 = arith.constant 0.000000e+00 : f32
    %7 = vector.broadcast %cst_8 : f32 to vector<128x128xf32>
    %8 = arith.maximumf %6, %7 : vector<128x128xf32>
    %c0_9 = arith.constant 0 : index
    %c0_10 = arith.constant 0 : index
    %9 = vector.load %arg5[%c0_9, %c0_10] : memref<128x128xf32, #tpu.memory_space<vmem>>, vector<128x128xf32>
    tpu.vector_store %arg5[%c0_9, %c0_10], %8 {strides = array<i32>} : memref<128x128xf32, #tpu.memory_space<vmem>>, vector<128x128xf32>,
    return
  }
  func.func @transform_0(%arg0: i32) -> (i32, i32) {
    %c0_i32 = arith.constant 0 : i32
    %c0_i32_0 = arith.constant 0 : i32
    return %arg0, %c0_i32 : i32, i32
  }
  func.func @transform_1(%arg0: i32) -> (i32, i32) {
    %c0_i32 = arith.constant 0 : i32
    %c0_i32_0 = arith.constant 0 : i32
    return %arg0, %c0_i32 : i32, i32
  }
  func.func @transform_2(%arg0: i32) -> (i32, i32) {
    %c0_i32 = arith.constant 0 : i32
    %c0_i32_0 = arith.constant 0 : i32
    %c0_i32_1 = arith.constant 0 : i32
    return %c0_i32, %c0_i32_0 : i32, i32
  }
  func.func @transform_3(%arg0: i32) -> (i32, i32) {
    %c0_i32 = arith.constant 0 : i32
    %c0_i32_0 = arith.constant 0 : i32
    %c0_i32_1 = arith.constant 0 : i32
    return %c0_i32, %c0_i32_0 : i32, i32
  }
  func.func @transform_4(%arg0: i32) -> (i32, i32) {
    %c0_i32 = arith.constant 0 : i32
    %c0_i32_0 = arith.constant 0 : i32
    return %arg0, %c0_i32 : i32, i32
  }
}

</mosaic_0001>

<llo_original>
// kernel: tpu_custom_call.1
$region0: #{tpu_custom_call.1}
  #allocation0 [shape = 'u32[]', space=smem, size = 0x4, offset = 0x4, fixed_abs, tag = 'smem constant byte address 0x4 - core index']
  #allocation1 [shape = 'u32[144,128]{1,0:T(1,128)}', space=vmem, size = 0x12000, scoped, tag = 'internal scratch']
  %s0 = inlined_call_operand.vmem [shape: bf16[128,64], index: 0, kind: input, shape index: {}]
  %s1 = inlined_call_operand.hbm [shape: bf16[128,512], index: 1, kind: input, shape index: {}]
  %s2 = inlined_call_operand.vmem [shape: bf16[64,128], index: 2, kind: input, shape index: {}]
  %s3 = inlined_call_operand.hbm [shape: bf16[512,128], index: 3, kind: input, shape index: {}]
  %s4 = inlined_call_operand.hbm [shape: f32[128,128], index: 4, kind: output, shape index: {}]
  %s5 = sld [smem:[#allocation0]]
  $region34: #{tpu_custom_call.1} parent=0
    _
  %s7 = ssub.s32 1, %s5
  %s8 = scalar_select 0, %s7, %s5
  $region1: #{tpu_custom_call.1} parent=0
    #allocation2 [shape = 'u8[131072]{0}', space=vmem, size = 0x20000, scoped, tag = 'input window, operand 1, single buffered']
    #allocation3 [shape = 's32[1]{0}', space=sflag, size = 0x4, scoped, tag = 'scoped memory for tpu_custom_call.1']
    #allocation4 [shape = 's32[1]{0}', space=sflag, size = 0x4, scoped, tag = 'scoped memory for tpu_custom_call.1']
    #allocation5 [shape = 'u8[131072]{0}', space=vmem, size = 0x20000, scoped, tag = 'input window, operand 3, single buffered']
    #allocation6 [shape = 's32[1]{0}', space=sflag, size = 0x4, scoped, tag = 'scoped memory for tpu_custom_call.1']
    #allocation7 [shape = 'u8[65536]{0}', space=vmem, size = 0x10000, scoped, tag = 'output window, operand 0, single buffered']
    %9 = vsyncpa [#allocation3], 0
    %10 = vsyncpa [#allocation6], 0
    %11 = vsyncpa [#allocation4], 0
    // Predicated region
    $region2: #{tpu_custom_call.1} parent=1 // pred_check
      _
    $region3: #{tpu_custom_call.1} parent=1 // pred_check_branch
      %13 = sbr.rel (0) target = $region5
    $region4: #{tpu_custom_call.1} parent=1 // pred_region
      _
    $region5: #{tpu_custom_call.1} parent=1 // pred_fallthru
      _
    // Predicated region
    $region6: #{tpu_custom_call.1} parent=1 // pred_check
      _
    $region7: #{tpu_custom_call.1} parent=1 // pred_check_branch
      %15 = sbr.rel (0) target = $region9
    $region8: #{tpu_custom_call.1} parent=1 // pred_region
      %s17 = ssub.s32 4096, 4096
      %18 = vsyncadd [#allocation3], %s17
      %s19 = sshll.u32 [#allocation2], 4
      %s20 = int_to_ptr.vmem [resolvable:$true] %s19
      %25 = dma.hbm_to_vmem [thread:$0]  %s1, 4096, %s20, [#allocation3], 256, 256, 16
    $region9: #{tpu_custom_call.1} parent=1 // pred_fallthru
      _
    // Predicated region
    $region10: #{tpu_custom_call.1} parent=1 // pred_check
      _
    $region11: #{tpu_custom_call.1} parent=1 // pred_check_branch
      %27 = sbr.rel (0) target = $region13
    $region12: #{tpu_custom_call.1} parent=1 // pred_region
      _
    $region13: #{tpu_custom_call.1} parent=1 // pred_fallthru
      _
    // Predicated region
    $region14: #{tpu_custom_call.1} parent=1 // pred_check
      _
    $region15: #{tpu_custom_call.1} parent=1 // pred_check_branch
      %29 = sbr.rel (0) target = $region17
    $region16: #{tpu_custom_call.1} parent=1 // pred_region
      %s31 = ssub.s32 4096, 4096
      %32 = vsyncadd [#allocation6], %s31
      %s33 = sshll.u32 [#allocation5], 4
      %s34 = int_to_ptr.vmem [resolvable:$true] %s33
      %39 = dma.hbm_to_vmem [thread:$0]  %s3, 4096, %s34, [#allocation6], 64, 64, 4
    $region17: #{tpu_custom_call.1} parent=1 // pred_fallthru
      _
    // Predicated region
    $region18: #{tpu_custom_call.1} parent=1 // pred_check
      _
    $region19: #{tpu_custom_call.1} parent=1 // pred_check_branch
      %41 = sbr.rel (0) target = $region21
    $region20: #{tpu_custom_call.1} parent=1 // pred_region
      %42 = dma.done [#allocation3], 4096
    $region21: #{tpu_custom_call.1} parent=1 // pred_fallthru
      _
    // Predicated region
    $region22: #{tpu_custom_call.1} parent=1 // pred_check
      _
    $region23: #{tpu_custom_call.1} parent=1 // pred_check_branch
      %44 = sbr.rel (0) target = $region25
    $region24: #{tpu_custom_call.1} parent=1 // pred_region
      %45 = dma.done [#allocation6], 4096
    $region25: #{tpu_custom_call.1} parent=1 // pred_fallthru
      _
    %v47 = vld [vmem:[#allocation2] sm:$0xff]
    %v48 = vld [vmem:[#allocation2 + $0x8] sm:$0xff]
    %v49 = vld [vmem:[#allocation2 + $0x10] sm:$0xff]
    %v50 = vld [vmem:[#allocation2 + $0x18] sm:$0xff]
    %v51 = vld [vmem:[#allocation2 + $0x20] sm:$0xff]
    %v52 = vld [vmem:[#allocation2 + $0x28] sm:$0xff]
    %v53 = vld [vmem:[#allocation2 + $0x30] sm:$0xff]
    %v54 = vld [vmem:[#allocation2 + $0x38] sm:$0xff]
    %v55 = vld [vmem:[#allocation2 + $0x40] sm:$0xff]
    %v56 = vld [vmem:[#allocation2 + $0x48] sm:$0xff]
    %v57 = vld [vmem:[#allocation2 + $0x50] sm:$0xff]
    %v58 = vld [vmem:[#allocation2 + $0x58] sm:$0xff]
    %v59 = vld [vmem:[#allocation2 + $0x60] sm:$0xff]
    %v60 = vld [vmem:[#allocation2 + $0x68] sm:$0xff]
    %v61 = vld [vmem:[#allocation2 + $0x70] sm:$0xff]
    %v62 = vld [vmem:[#allocation2 + $0x78] sm:$0xff]
    %v63 = vld [vmem:[#allocation2 + $0x80] sm:$0xff]
    %v64 = vld [vmem:[#allocation2 + $0x88] sm:$0xff]
    %v65 = vld [vmem:[#allocation2 + $0x90] sm:$0xff]
    %v66 = vld [vmem:[#allocation2 + $0x98] sm:$0xff]
    %v67 = vld [vmem:[#allocation2 + $0xa0] sm:$0xff]
    %v68 = vld [vmem:[#allocation2 + $0xa8] sm:$0xff]
    %v69 = vld [vmem:[#allocation2 + $0xb0] sm:$0xff]
    %v70 = vld [vmem:[#allocation2 + $0xb8] sm:$0xff]
    %v71 = vld [vmem:[#allocation2 + $0xc0] sm:$0xff]
    %v72 = vld [vmem:[#allocation2 + $0xc8] sm:$0xff]
    %v73 = vld [vmem:[#allocation2 + $0xd0] sm:$0xff]
    %v74 = vld [vmem:[#allocation2 + $0xd8] sm:$0xff]
    %v75 = vld [vmem:[#allocation2 + $0xe0] sm:$0xff]
    %v76 = vld [vmem:[#allocation2 + $0xe8] sm:$0xff]
    %v77 = vld [vmem:[#allocation2 + $0xf0] sm:$0xff]
    %v78 = vld [vmem:[#allocation2 + $0xf8] sm:$0xff]
    %v79 = vld [vmem:[#allocation5] sm:$0xf]
    %v80 = vld [vmem:[#allocation5 + $0x4] sm:$0xf]
    %v81 = vld [vmem:[#allocation5 + $0x8] sm:$0xf]
    %v82 = vld [vmem:[#allocation5 + $0xc] sm:$0xf]
    %v83 = vld [vmem:[#allocation5 + $0x10] sm:$0xf]
    %v84 = vld [vmem:[#allocation5 + $0x14] sm:$0xf]
    %v85 = vld [vmem:[#allocation5 + $0x18] sm:$0xf]
    %v86 = vld [vmem:[#allocation5 + $0x1c] sm:$0xf]
    %v87 = vld [vmem:[#allocation5 + $0x20] sm:$0xf]
    %v88 = vld [vmem:[#allocation5 + $0x24] sm:$0xf]
    %v89 = vld [vmem:[#allocation5 + $0x28] sm:$0xf]
    %v90 = vld [vmem:[#allocation5 + $0x2c] sm:$0xf]
    %v91 = vld [vmem:[#allocation5 + $0x30] sm:$0xf]
    %v92 = vld [vmem:[#allocation5 + $0x34] sm:$0xf]
    %v93 = vld [vmem:[#allocation5 + $0x38] sm:$0xf]
    %v94 = vld [vmem:[#allocation5 + $0x3c] sm:$0xf]
    %v95 = vld [vmem:[#allocation5 + $0x40] sm:$0xf]
    %v96 = vld [vmem:[#allocation5 + $0x44] sm:$0xf]
    %v97 = vld [vmem:[#allocation5 + $0x48] sm:$0xf]
    %v98 = vld [vmem:[#allocation5 + $0x4c] sm:$0xf]
    %v99 = vld [vmem:[#allocation5 + $0x50] sm:$0xf]
    %v100 = vld [vmem:[#allocation5 + $0x54] sm:$0xf]
    %v101 = vld [vmem:[#allocation5 + $0x58] sm:$0xf]
    %v102 = vld [vmem:[#allocation5 + $0x5c] sm:$0xf]
    %v103 = vld [vmem:[#allocation5 + $0x60] sm:$0xf]
    %v104 = vld [vmem:[#allocation5 + $0x64] sm:$0xf]
    %v105 = vld [vmem:[#allocation5 + $0x68] sm:$0xf]
    %v106 = vld [vmem:[#allocation5 + $0x6c] sm:$0xf]
    %v107 = vld [vmem:[#allocation5 + $0x70] sm:$0xf]
    %v108 = vld [vmem:[#allocation5 + $0x74] sm:$0xf]
    %v109 = vld [vmem:[#allocation5 + $0x78] sm:$0xf]
    %v110 = vld [vmem:[#allocation5 + $0x7c] sm:$0xf]
    %v111 = vld [vmem:[#allocation5 + $0x80] sm:$0xf]
    %v112 = vld [vmem:[#allocation5 + $0x84] sm:$0xf]
    %v113 = vld [vmem:[#allocation5 + $0x88] sm:$0xf]
    %v114 = vld [vmem:[#allocation5 + $0x8c] sm:$0xf]
    %v115 = vld [vmem:[#allocation5 + $0x90] sm:$0xf]
    %v116 = vld [vmem:[#allocation5 + $0x94] sm:$0xf]
    %v117 = vld [vmem:[#allocation5 + $0x98] sm:$0xf]
    %v118 = vld [vmem:[#allocation5 + $0x9c] sm:$0xf]
    %v119 = vld [vmem:[#allocation5 + $0xa0] sm:$0xf]
    %v120 = vld [vmem:[#allocation5 + $0xa4] sm:$0xf]
    %v121 = vld [vmem:[#allocation5 + $0xa8] sm:$0xf]
    %v122 = vld [vmem:[#allocation5 + $0xac] sm:$0xf]
    %v123 = vld [vmem:[#allocation5 + $0xb0] sm:$0xf]
    %v124 = vld [vmem:[#allocation5 + $0xb4] sm:$0xf]
    %v125 = vld [vmem:[#allocation5 + $0xb8] sm:$0xf]
    %v126 = vld [vmem:[#allocation5 + $0xbc] sm:$0xf]
    %v127 = vld [vmem:[#allocation5 + $0xc0] sm:$0xf]
    %v128 = vld [vmem:[#allocation5 + $0xc4] sm:$0xf]
    %v129 = vld [vmem:[#allocation5 + $0xc8] sm:$0xf]
    %v130 = vld [vmem:[#allocation5 + $0xcc] sm:$0xf]
    %v131 = vld [vmem:[#allocation5 + $0xd0] sm:$0xf]
    %v132 = vld [vmem:[#allocation5 + $0xd4] sm:$0xf]
    %v133 = vld [vmem:[#allocation5 + $0xd8] sm:$0xf]
    %v134 = vld [vmem:[#allocation5 + $0xdc] sm:$0xf]
    %v135 = vld [vmem:[#allocation5 + $0xe0] sm:$0xf]
    %v136 = vld [vmem:[#allocation5 + $0xe4] sm:$0xf]
    %v137 = vld [vmem:[#allocation5 + $0xe8] sm:$0xf]
    %v138 = vld [vmem:[#allocation5 + $0xec] sm:$0xf]
    %v139 = vld [vmem:[#allocation5 + $0xf0] sm:$0xf]
    %v140 = vld [vmem:[#allocation5 + $0xf4] sm:$0xf]
    %v141 = vld [vmem:[#allocation5 + $0xf8] sm:$0xf]
    %v142 = vld [vmem:[#allocation5 + $0xfc] sm:$0xf]
    %v143 = vld [vmem:[%s0] sm:$0xf]
    %v144 = vld [vmem:[%s0 + $0x4] sm:$0xf]
    %v145 = vld [vmem:[%s0 + $0x8] sm:$0xf]
    %v146 = vld [vmem:[%s0 + $0xc] sm:$0xf]
    %v147 = vld [vmem:[%s0 + $0x10] sm:$0xf]
    %v148 = vld [vmem:[%s0 + $0x14] sm:$0xf]
    %v149 = vld [vmem:[%s0 + $0x18] sm:$0xf]
    %v150 = vld [vmem:[%s0 + $0x1c] sm:$0xf]
    %v151 = vld [vmem:[%s0 + $0x20] sm:$0xf]
    %v152 = vld [vmem:[%s0 + $0x24] sm:$0xf]
    %v153 = vld [vmem:[%s0 + $0x28] sm:$0xf]
    %v154 = vld [vmem:[%s0 + $0x2c] sm:$0xf]
    %v155 = vld [vmem:[%s0 + $0x30] sm:$0xf]
    %v156 = vld [vmem:[%s0 + $0x34] sm:$0xf]
    %v157 = vld [vmem:[%s0 + $0x38] sm:$0xf]
    %v158 = vld [vmem:[%s0 + $0x3c] sm:$0xf]
    %v159 = vld [vmem:[%s2] sm:$0xf]
    %v160 = vld [vmem:[%s2 + $0x4] sm:$0xf]
    %v161 = vld [vmem:[%s2 + $0x8] sm:$0xf]
    %v162 = vld [vmem:[%s2 + $0xc] sm:$0xf]
    %v163 = vld [vmem:[%s2 + $0x10] sm:$0xf]
    %v164 = vld [vmem:[%s2 + $0x14] sm:$0xf]
    %v165 = vld [vmem:[%s2 + $0x18] sm:$0xf]
    %v166 = vld [vmem:[%s2 + $0x1c] sm:$0xf]
    %v183 = vunpack.c.l.b16 %v143
    %v184 = vunpack.c.l.b16 %v144
    %v185 = vunpack.c.l.b16 %v145
    %v186 = vunpack.c.l.b16 %v146
    %v187 = vunpack.c.l.b16 %v147
    %v188 = vunpack.c.l.b16 %v148
    %v189 = vunpack.c.l.b16 %v149
    %v190 = vunpack.c.l.b16 %v150
    %v191 = vunpack.c.l.b16 %v151
    %v192 = vunpack.c.l.b16 %v152
    %v193 = vunpack.c.l.b16 %v153
    %v194 = vunpack.c.l.b16 %v154
    %v195 = vunpack.c.l.b16 %v155
    %v196 = vunpack.c.l.b16 %v156
    %v197 = vunpack.c.l.b16 %v157
    %v198 = vunpack.c.l.b16 %v158
    %v199 = vpack.c.b16 %v184, %v183
    %v200 = vpack.c.b16 %v186, %v185
    %v201 = vpack.c.b16 %v188, %v187
    %v202 = vpack.c.b16 %v190, %v189
    %v203 = vpack.c.b16 %v192, %v191
    %v204 = vpack.c.b16 %v194, %v193
    %v205 = vpack.c.b16 %v196, %v195
    %v206 = vpack.c.b16 %v198, %v197
    %v215 = vunpack.c.l.b16 %v159
    %v216 = vunpack.c.l.b16 %v160
    %v217 = vunpack.c.l.b16 %v161
    %v218 = vunpack.c.l.b16 %v162
    %v219 = vunpack.c.l.b16 %v163
    %v220 = vunpack.c.l.b16 %v164
    %v221 = vunpack.c.l.b16 %v165
    %v222 = vunpack.c.l.b16 %v166
    %v223 = vpack.c.b16 %v216, %v215
    %v224 = vpack.c.b16 %v218, %v217
    %v225 = vpack.c.b16 %v220, %v219
    %v226 = vpack.c.b16 %v222, %v221
    %vm231 = vcmask 523264
    %v233 = vsel %vm231, %v199, 0
    %v236 = vsel %vm231, %v200, 0
    %v239 = vsel %vm231, %v201, 0
    %v242 = vsel %vm231, %v202, 0
    %v245 = vsel %vm231, %v203, 0
    %v248 = vsel %vm231, %v204, 0
    %v251 = vsel %vm231, %v205, 0
    %v254 = vsel %vm231, %v206, 0
    %256 = vmatprep.subr.bf16.mxu0 0
    %257 = vmatpush1.bf16.msra.mxu0 %v223
    %258 = vmatprep.subr.bf16.mxu0 0
    %259 = vmatpush1.bf16.msra.mxu0 %v224
    %260 = vmatprep.subr.bf16.mxu0 0
    %261 = vmatpush1.bf16.msra.mxu0 %v225
    %262 = vmatprep.subr.bf16.mxu0 0
    %263 = vmatpush1.bf16.msra.mxu0 %v226
    %264 = vmatprep.subr.bf16.mxu0 0
    %265 = vmatpush1.bf16.msra.mxu0 0
    %266 = vmatprep.subr.bf16.mxu0 0
    %267 = vmatpush1.bf16.msra.mxu0 0
    %268 = vmatprep.subr.bf16.mxu0 0
    %269 = vmatpush1.bf16.msra.mxu0 0
    %270 = vmatprep.subr.bf16.mxu0 0
    %271 = vmatpush1.bf16.msra.mxu0 0
    %272 = vmatprep.subr.bf16.mxu0 0
    %273 = vmatpush1.bf16.msra.mxu0 0
    %274 = vmatprep.subr.bf16.mxu0 0
    %275 = vmatpush1.bf16.msra.mxu0 0
    %276 = vmatprep.subr.bf16.mxu0 0
    %277 = vmatpush1.bf16.msra.mxu0 0
    %278 = vmatprep.subr.bf16.mxu0 0
    %279 = vmatpush1.bf16.msra.mxu0 0
    %280 = vmatprep.subr.bf16.mxu0 0
    %281 = vmatpush1.bf16.msra.mxu0 0
    %282 = vmatprep.subr.bf16.mxu0 0
    %283 = vmatpush1.bf16.msra.mxu0 0
    %284 = vmatprep.subr.bf16.mxu0 0
    %285 = vmatpush1.bf16.msra.mxu0 0
    %286 = vmatprep.subr.bf16.mxu0 0
    %287 = vmatpush1.bf16.msra.mxu0 0
    %288 = vmatprep.mubr.bf16.mxu0 0
    %289 = vmatmul.mubr.bf16.gmra.mrb[0].mxu0 %v233
    %v290 = vpop.f32.mrb[0].mxu0
    %v291 = vadd.f32 0.0, %v290
    %v292 = vpop.f32.mrb[0].mxu0
    %v293 = vpop.f32.mrb[0].mxu0
    %v294 = vadd.f32 0.0, %v293
    %v295 = vpop.f32.mrb[0].mxu0
    %296 = vmatprep.mubr.bf16.mxu0 0
    %297 = vmatmul.mubr.bf16.gmra.mrb[0].mxu0 %v236
    %v298 = vpop.f32.mrb[0].mxu0
    %v299 = vadd.f32 0.0, %v298
    %v300 = vpop.f32.mrb[0].mxu0
    %v301 = vpop.f32.mrb[0].mxu0
    %v302 = vadd.f32 0.0, %v301
    %v303 = vpop.f32.mrb[0].mxu0
    %304 = vmatprep.mubr.bf16.mxu0 0
    %305 = vmatmul.mubr.bf16.gmra.mrb[0].mxu0 %v239
    %v306 = vpop.f32.mrb[0].mxu0
    %v307 = vadd.f32 0.0, %v306
    %v308 = vpop.f32.mrb[0].mxu0
    %v309 = vpop.f32.mrb[0].mxu0
    %v310 = vadd.f32 0.0, %v309
    %v311 = vpop.f32.mrb[0].mxu0
    %312 = vmatprep.mubr.bf16.mxu0 0
    %313 = vmatmul.mubr.bf16.gmra.mrb[0].mxu0 %v242
    %v314 = vpop.f32.mrb[0].mxu0
    %v315 = vadd.f32 0.0, %v314
    %v316 = vpop.f32.mrb[0].mxu0
    %v317 = vpop.f32.mrb[0].mxu0
    %v318 = vadd.f32 0.0, %v317
    %v319 = vpop.f32.mrb[0].mxu0
    %320 = vmatprep.mubr.bf16.mxu0 0
    %321 = vmatmul.mubr.bf16.gmra.mrb[0].mxu0 %v245
    %v322 = vpop.f32.mrb[0].mxu0
    %v323 = vadd.f32 0.0, %v322
    %v324 = vpop.f32.mrb[0].mxu0
    %v325 = vpop.f32.mrb[0].mxu0
    %v326 = vadd.f32 0.0, %v325
    %v327 = vpop.f32.mrb[0].mxu0
    %328 = vmatprep.mubr.bf16.mxu0 0
    %329 = vmatmul.mubr.bf16.gmra.mrb[0].mxu0 %v248
    %v330 = vpop.f32.mrb[0].mxu0
    %v331 = vadd.f32 0.0, %v330
    %v332 = vpop.f32.mrb[0].mxu0
    %v333 = vpop.f32.mrb[0].mxu0
    %v334 = vadd.f32 0.0, %v333
    %v335 = vpop.f32.mrb[0].mxu0
    %336 = vmatprep.mubr.bf16.mxu0 0
    %337 = vmatmul.mubr.bf16.gmra.mrb[0].mxu0 %v251
    %v338 = vpop.f32.mrb[0].mxu0
    %v339 = vadd.f32 0.0, %v338
    %v340 = vpop.f32.mrb[0].mxu0
    %v341 = vpop.f32.mrb[0].mxu0
    %v342 = vadd.f32 0.0, %v341
    %v343 = vpop.f32.mrb[0].mxu0
    %344 = vmatprep.mubr.bf16.mxu0 0
    %345 = vmatmul.mubr.bf16.gmra.mrb[0].mxu0 %v254
    %v346 = vpop.f32.mrb[0].mxu0
    %v347 = vadd.f32 0.0, %v346
    %v348 = vpop.f32.mrb[0].mxu0
    %v349 = vpop.f32.mrb[0].mxu0
    %v350 = vadd.f32 0.0, %v349
    %v351 = vpop.f32.mrb[0].mxu0
    %352 = vdwg.mxu0
    %v385 = vunpack.c.l.b16 %v47
    %v386 = vunpack.c.h.b16 %v47
    %v387 = vunpack.c.l.b16 %v48
    %v388 = vunpack.c.h.b16 %v48
    %v389 = vunpack.c.l.b16 %v49
    %v390 = vunpack.c.h.b16 %v49
    %v391 = vunpack.c.l.b16 %v50
    %v392 = vunpack.c.h.b16 %v50
    %v393 = vunpack.c.l.b16 %v51
    %v394 = vunpack.c.h.b16 %v51
    %v395 = vunpack.c.l.b16 %v52
    %v396 = vunpack.c.h.b16 %v52
    %v397 = vunpack.c.l.b16 %v53
    %v398 = vunpack.c.h.b16 %v53
    %v399 = vunpack.c.l.b16 %v54
    %v400 = vunpack.c.h.b16 %v54
    %v401 = vunpack.c.l.b16 %v55
    %v402 = vunpack.c.h.b16 %v55
    %v403 = vunpack.c.l.b16 %v56
    %v404 = vunpack.c.h.b16 %v56
    %v405 = vunpack.c.l.b16 %v57
    %v406 = vunpack.c.h.b16 %v57
    %v407 = vunpack.c.l.b16 %v58
    %v408 = vunpack.c.h.b16 %v58
    %v409 = vunpack.c.l.b16 %v59
    %v410 = vunpack.c.h.b16 %v59
    %v411 = vunpack.c.l.b16 %v60
    %v412 = vunpack.c.h.b16 %v60
    %v413 = vunpack.c.l.b16 %v61
    %v414 = vunpack.c.h.b16 %v61
    %v415 = vunpack.c.l.b16 %v62
    %v416 = vunpack.c.h.b16 %v62
    %v417 = vunpack.c.l.b16 %v63
    %v418 = vunpack.c.h.b16 %v63
    %v419 = vunpack.c.l.b16 %v64
    %v420 = vunpack.c.h.b16 %v64
    %v421 = vunpack.c.l.b16 %v65
    %v422 = vunpack.c.h.b16 %v65
    %v423 = vunpack.c.l.b16 %v66
    %v424 = vunpack.c.h.b16 %v66
    %v425 = vunpack.c.l.b16 %v67
    %v426 = vunpack.c.h.b16 %v67
    %v427 = vunpack.c.l.b16 %v68
    %v428 = vunpack.c.h.b16 %v68
    %v429 = vunpack.c.l.b16 %v69
    %v430 = vunpack.c.h.b16 %v69
    %v431 = vunpack.c.l.b16 %v70
    %v432 = vunpack.c.h.b16 %v70
    %v433 = vunpack.c.l.b16 %v71
    %v434 = vunpack.c.h.b16 %v71
    %v435 = vunpack.c.l.b16 %v72
    %v436 = vunpack.c.h.b16 %v72
    %v437 = vunpack.c.l.b16 %v73
    %v438 = vunpack.c.h.b16 %v73
    %v439 = vunpack.c.l.b16 %v74
    %v440 = vunpack.c.h.b16 %v74
    %v441 = vunpack.c.l.b16 %v75
    %v442 = vunpack.c.h.b16 %v75
    %v443 = vunpack.c.l.b16 %v76
    %v444 = vunpack.c.h.b16 %v76
    %v445 = vunpack.c.l.b16 %v77
    %v446 = vunpack.c.h.b16 %v77
    %v447 = vunpack.c.l.b16 %v78
    %v448 = vunpack.c.h.b16 %v78
    %v449 = vpack.c.b16 %v389, %v385
    %v450 = vpack.c.b16 %v390, %v386
    %v451 = vpack.c.b16 %v391, %v387
    %v452 = vpack.c.b16 %v392, %v388
    %v453 = vpack.c.b16 %v397, %v393
    %v454 = vpack.c.b16 %v398, %v394
    %v455 = vpack.c.b16 %v399, %v395
    %v456 = vpack.c.b16 %v400, %v396
    %v457 = vpack.c.b16 %v405, %v401
    %v458 = vpack.c.b16 %v406, %v402
    %v459 = vpack.c.b16 %v407, %v403
    %v460 = vpack.c.b16 %v408, %v404
    %v461 = vpack.c.b16 %v413, %v409
    %v462 = vpack.c.b16 %v414, %v410
    %v463 = vpack.c.b16 %v415, %v411
    %v464 = vpack.c.b16 %v416, %v412
    %v465 = vpack.c.b16 %v421, %v417
    %v466 = vpack.c.b16 %v422, %v418
    %v467 = vpack.c.b16 %v423, %v419
    %v468 = vpack.c.b16 %v424, %v420
    %v469 = vpack.c.b16 %v429, %v425
    %v470 = vpack.c.b16 %v430, %v426
    %v471 = vpack.c.b16 %v431, %v427
    %v472 = vpack.c.b16 %v432, %v428
    %v473 = vpack.c.b16 %v437, %v433
    %v474 = vpack.c.b16 %v438, %v434
    %v475 = vpack.c.b16 %v439, %v435
    %v476 = vpack.c.b16 %v440, %v436
    %v477 = vpack.c.b16 %v445, %v441
    %v478 = vpack.c.b16 %v446, %v442
    %v479 = vpack.c.b16 %v447, %v443
    %v480 = vpack.c.b16 %v448, %v444
    %v577 = vunpack.c.l.b16 %v79
    %v578 = vunpack.c.l.b16 %v80
    %v579 = vunpack.c.l.b16 %v81
    %v580 = vunpack.c.l.b16 %v82
    %v581 = vunpack.c.l.b16 %v83
    %v582 = vunpack.c.l.b16 %v84
    %v583 = vunpack.c.l.b16 %v85
    %v584 = vunpack.c.l.b16 %v86
    %v585 = vunpack.c.l.b16 %v87
    %v586 = vunpack.c.l.b16 %v88
    %v587 = vunpack.c.l.b16 %v89
    %v588 = vunpack.c.l.b16 %v90
    %v589 = vunpack.c.l.b16 %v91
    %v590 = vunpack.c.l.b16 %v92
    %v591 = vunpack.c.l.b16 %v93
    %v592 = vunpack.c.l.b16 %v94
    %v593 = vunpack.c.l.b16 %v95
    %v594 = vunpack.c.l.b16 %v96
    %v595 = vunpack.c.l.b16 %v97
    %v596 = vunpack.c.l.b16 %v98
    %v597 = vunpack.c.l.b16 %v99
    %v598 = vunpack.c.l.b16 %v100
    %v599 = vunpack.c.l.b16 %v101
    %v600 = vunpack.c.l.b16 %v102
    %v601 = vunpack.c.l.b16 %v103
    %v602 = vunpack.c.l.b16 %v104
    %v603 = vunpack.c.l.b16 %v105
    %v604 = vunpack.c.l.b16 %v106
    %v605 = vunpack.c.l.b16 %v107
    %v606 = vunpack.c.l.b16 %v108
    %v607 = vunpack.c.l.b16 %v109
    %v608 = vunpack.c.l.b16 %v110
    %v609 = vunpack.c.l.b16 %v111
    %v610 = vunpack.c.l.b16 %v112
    %v611 = vunpack.c.l.b16 %v113
    %v612 = vunpack.c.l.b16 %v114
    %v613 = vunpack.c.l.b16 %v115
    %v614 = vunpack.c.l.b16 %v116
    %v615 = vunpack.c.l.b16 %v117
    %v616 = vunpack.c.l.b16 %v118
    %v617 = vunpack.c.l.b16 %v119
    %v618 = vunpack.c.l.b16 %v120
    %v619 = vunpack.c.l.b16 %v121
    %v620 = vunpack.c.l.b16 %v122
    %v621 = vunpack.c.l.b16 %v123
    %v622 = vunpack.c.l.b16 %v124
    %v623 = vunpack.c.l.b16 %v125
    %v624 = vunpack.c.l.b16 %v126
    %v625 = vunpack.c.l.b16 %v127
    %v626 = vunpack.c.l.b16 %v128
    %v627 = vunpack.c.l.b16 %v129
    %v628 = vunpack.c.l.b16 %v130
    %v629 = vunpack.c.l.b16 %v131
    %v630 = vunpack.c.l.b16 %v132
    %v631 = vunpack.c.l.b16 %v133
    %v632 = vunpack.c.l.b16 %v134
    %v633 = vunpack.c.l.b16 %v135
    %v634 = vunpack.c.l.b16 %v136
    %v635 = vunpack.c.l.b16 %v137
    %v636 = vunpack.c.l.b16 %v138
    %v637 = vunpack.c.l.b16 %v139
    %v638 = vunpack.c.l.b16 %v140
    %v639 = vunpack.c.l.b16 %v141
    %v640 = vunpack.c.l.b16 %v142
    %v641 = vpack.c.b16 %v578, %v577
    %v642 = vpack.c.b16 %v580, %v579
    %v643 = vpack.c.b16 %v582, %v581
    %v644 = vpack.c.b16 %v584, %v583
    %v645 = vpack.c.b16 %v586, %v585
    %v646 = vpack.c.b16 %v588, %v587
    %v647 = vpack.c.b16 %v590, %v589
    %v648 = vpack.c.b16 %v592, %v591
    %v649 = vpack.c.b16 %v594, %v593
    %v650 = vpack.c.b16 %v596, %v595
    %v651 = vpack.c.b16 %v598, %v597
    %v652 = vpack.c.b16 %v600, %v599
    %v653 = vpack.c.b16 %v602, %v601
    %v654 = vpack.c.b16 %v604, %v603
    %v655 = vpack.c.b16 %v606, %v605
    %v656 = vpack.c.b16 %v608, %v607
    %v657 = vpack.c.b16 %v610, %v609
    %v658 = vpack.c.b16 %v612, %v611
    %v659 = vpack.c.b16 %v614, %v613
    %v660 = vpack.c.b16 %v616, %v615
    %v661 = vpack.c.b16 %v618, %v617
    %v662 = vpack.c.b16 %v620, %v619
    %v663 = vpack.c.b16 %v622, %v621
    %v664 = vpack.c.b16 %v624, %v623
    %v665 = vpack.c.b16 %v626, %v625
    %v666 = vpack.c.b16 %v628, %v627
    %v667 = vpack.c.b16 %v630, %v629
    %v668 = vpack.c.b16 %v632, %v631
    %v669 = vpack.c.b16 %v634, %v633
    %v670 = vpack.c.b16 %v636, %v635
    %v671 = vpack.c.b16 %v638, %v637
    %v672 = vpack.c.b16 %v640, %v639
    %705 = vmatprep.subr.bf16.mxu0 0
    %706 = vmatpush1.bf16.msra.mxu0 %v641
    %707 = vmatprep.subr.bf16.mxu0 0
    %708 = vmatpush1.bf16.msra.mxu0 %v642
    %709 = vmatprep.subr.bf16.mxu0 0
    %710 = vmatpush1.bf16.msra.mxu0 %v643
    %711 = vmatprep.subr.bf16.mxu0 0
    %712 = vmatpush1.bf16.msra.mxu0 %v644
    %713 = vmatprep.subr.bf16.mxu0 0
    %714 = vmatpush1.bf16.msra.mxu0 %v645
    %715 = vmatprep.subr.bf16.mxu0 0
    %716 = vmatpush1.bf16.msra.mxu0 %v646
    %717 = vmatprep.subr.bf16.mxu0 0
    %718 = vmatpush1.bf16.msra.mxu0 %v647
    %719 = vmatprep.subr.bf16.mxu0 0
    %720 = vmatpush1.bf16.msra.mxu0 %v648
    %721 = vmatprep.subr.bf16.mxu0 0
    %722 = vmatpush1.bf16.msra.mxu0 %v649
    %723 = vmatprep.subr.bf16.mxu0 0
    %724 = vmatpush1.bf16.msra.mxu0 %v650
    %725 = vmatprep.subr.bf16.mxu0 0
    %726 = vmatpush1.bf16.msra.mxu0 %v651
    %727 = vmatprep.subr.bf16.mxu0 0
    %728 = vmatpush1.bf16.msra.mxu0 %v652
    %729 = vmatprep.subr.bf16.mxu0 0
    %730 = vmatpush1.bf16.msra.mxu0 %v653
    %731 = vmatprep.subr.bf16.mxu0 0
    %732 = vmatpush1.bf16.msra.mxu0 %v654
    %733 = vmatprep.subr.bf16.mxu0 0
    %734 = vmatpush1.bf16.msra.mxu0 %v655
    %735 = vmatprep.subr.bf16.mxu0 0
    %736 = vmatpush1.bf16.msra.mxu0 %v656
    %737 = vmatprep.mubr.bf16.mxu0 %v450
    %738 = vmatmul.mubr.bf16.gmra.mrb[0].mxu0 %v449
    %v739 = vpop.f32.mrb[0].mxu0
    %v740 = vadd.f32 %v291, %v739
    %v741 = vpop.f32.mrb[0].mxu0
    %v742 = vpop.f32.mrb[0].mxu0
    %v743 = vadd.f32 %v294, %v742
    %v744 = vpop.f32.mrb[0].mxu0
    %745 = vmatprep.mubr.bf16.mxu0 %v454
    %746 = vmatmul.mubr.bf16.gmra.mrb[0].mxu0 %v453
    %v747 = vpop.f32.mrb[0].mxu0
    %v748 = vadd.f32 %v299, %v747
    %v749 = vpop.f32.mrb[0].mxu0
    %v750 = vpop.f32.mrb[0].mxu0
    %v751 = vadd.f32 %v302, %v750
    %v752 = vpop.f32.mrb[0].mxu0
    %753 = vmatprep.mubr.bf16.mxu0 %v458
    %754 = vmatmul.mubr.bf16.gmra.mrb[0].mxu0 %v457
    %v755 = vpop.f32.mrb[0].mxu0
    %v756 = vadd.f32 %v307, %v755
    %v757 = vpop.f32.mrb[0].mxu0
    %v758 = vpop.f32.mrb[0].mxu0
    %v759 = vadd.f32 %v310, %v758
    %v760 = vpop.f32.mrb[0].mxu0
    %761 = vmatprep.mubr.bf16.mxu0 %v462
    %762 = vmatmul.mubr.bf16.gmra.mrb[0].mxu0 %v461
    %v763 = vpop.f32.mrb[0].mxu0
    %v764 = vadd.f32 %v315, %v763
    %v765 = vpop.f32.mrb[0].mxu0
    %v766 = vpop.f32.mrb[0].mxu0
    %v767 = vadd.f32 %v318, %v766
    %v768 = vpop.f32.mrb[0].mxu0
    %769 = vmatprep.mubr.bf16.mxu0 %v466
    %770 = vmatmul.mubr.bf16.gmra.mrb[0].mxu0 %v465
    %v771 = vpop.f32.mrb[0].mxu0
    %v772 = vadd.f32 %v323, %v771
    %v773 = vpop.f32.mrb[0].mxu0
    %v774 = vpop.f32.mrb[0].mxu0
    %v775 = vadd.f32 %v326, %v774
    %v776 = vpop.f32.mrb[0].mxu0
    %777 = vmatprep.mubr.bf16.mxu0 %v470
    %778 = vmatmul.mubr.bf16.gmra.mrb[0].mxu0 %v469
    %v779 = vpop.f32.mrb[0].mxu0
    %v780 = vadd.f32 %v331, %v779
    %v781 = vpop.f32.mrb[0].mxu0
    %v782 = vpop.f32.mrb[0].mxu0
    %v783 = vadd.f32 %v334, %v782
    %v784 = vpop.f32.mrb[0].mxu0
    %785 = vmatprep.mubr.bf16.mxu0 %v474
    %786 = vmatmul.mubr.bf16.gmra.mrb[0].mxu0 %v473
    %v787 = vpop.f32.mrb[0].mxu0
    %v788 = vadd.f32 %v339, %v787
    %v789 = vpop.f32.mrb[0].mxu0
    %v790 = vpop.f32.mrb[0].mxu0
    %v791 = vadd.f32 %v342, %v790
    %v792 = vpop.f32.mrb[0].mxu0
    %793 = vmatprep.mubr.bf16.mxu0 %v478
    %794 = vmatmul.mubr.bf16.gmra.mrb[0].mxu0 %v477
    %v795 = vpop.f32.mrb[0].mxu0
    %v796 = vadd.f32 %v347, %v795
    %v797 = vpop.f32.mrb[0].mxu0
    %v798 = vpop.f32.mrb[0].mxu0
    %v799 = vadd.f32 %v350, %v798
    %v800 = vpop.f32.mrb[0].mxu0
    %801 = vdwg.mxu0
    %802 = vmatprep.subr.bf16.mxu0 0
    %803 = vmatpush1.bf16.msra.mxu0 %v657
    %804 = vmatprep.subr.bf16.mxu0 0
    %805 = vmatpush1.bf16.msra.mxu0 %v658
    %806 = vmatprep.subr.bf16.mxu0 0
    %807 = vmatpush1.bf16.msra.mxu0 %v659
    %808 = vmatprep.subr.bf16.mxu0 0
    %809 = vmatpush1.bf16.msra.mxu0 %v660
    %810 = vmatprep.subr.bf16.mxu0 0
    %811 = vmatpush1.bf16.msra.mxu0 %v661
    %812 = vmatprep.subr.bf16.mxu0 0
    %813 = vmatpush1.bf16.msra.mxu0 %v662
    %814 = vmatprep.subr.bf16.mxu0 0
    %815 = vmatpush1.bf16.msra.mxu0 %v663
    %816 = vmatprep.subr.bf16.mxu0 0
    %817 = vmatpush1.bf16.msra.mxu0 %v664
    %818 = vmatprep.subr.bf16.mxu0 0
    %819 = vmatpush1.bf16.msra.mxu0 %v665
    %820 = vmatprep.subr.bf16.mxu0 0
    %821 = vmatpush1.bf16.msra.mxu0 %v666
    %822 = vmatprep.subr.bf16.mxu0 0
    %823 = vmatpush1.bf16.msra.mxu0 %v667
    %824 = vmatprep.subr.bf16.mxu0 0
    %825 = vmatpush1.bf16.msra.mxu0 %v668
    %826 = vmatprep.subr.bf16.mxu0 0
    %827 = vmatpush1.bf16.msra.mxu0 %v669
    %828 = vmatprep.subr.bf16.mxu0 0
    %829 = vmatpush1.bf16.msra.mxu0 %v670
    %830 = vmatprep.subr.bf16.mxu0 0
    %831 = vmatpush1.bf16.msra.mxu0 %v671
    %832 = vmatprep.subr.bf16.mxu0 0
    %833 = vmatpush1.bf16.msra.mxu0 %v672
    %834 = vmatprep.mubr.bf16.mxu0 %v452
    %835 = vmatmul.mubr.bf16.gmra.mrb[0].mxu0 %v451
    %v836 = vpop.f32.mrb[0].mxu0
    %v837 = vadd.f32 %v740, %v836
    %v838 = vpop.f32.mrb[0].mxu0
    %v839 = vpop.f32.mrb[0].mxu0
    %v840 = vadd.f32 %v743, %v839
    %v841 = vpop.f32.mrb[0].mxu0
    %842 = vmatprep.mubr.bf16.mxu0 %v456
    %843 = vmatmul.mubr.bf16.gmra.mrb[0].mxu0 %v455
    %v844 = vpop.f32.mrb[0].mxu0
    %v845 = vadd.f32 %v748, %v844
    %v846 = vpop.f32.mrb[0].mxu0
    %v847 = vpop.f32.mrb[0].mxu0
    %v848 = vadd.f32 %v751, %v847
    %v849 = vpop.f32.mrb[0].mxu0
    %850 = vmatprep.mubr.bf16.mxu0 %v460
    %851 = vmatmul.mubr.bf16.gmra.mrb[0].mxu0 %v459
    %v852 = vpop.f32.mrb[0].mxu0
    %v853 = vadd.f32 %v756, %v852
    %v854 = vpop.f32.mrb[0].mxu0
    %v855 = vpop.f32.mrb[0].mxu0
    %v856 = vadd.f32 %v759, %v855
    %v857 = vpop.f32.mrb[0].mxu0
    %858 = vmatprep.mubr.bf16.mxu0 %v464
    %859 = vmatmul.mubr.bf16.gmra.mrb[0].mxu0 %v463
    %v860 = vpop.f32.mrb[0].mxu0
    %v861 = vadd.f32 %v764, %v860
    %v862 = vpop.f32.mrb[0].mxu0
    %v863 = vpop.f32.mrb[0].mxu0
    %v864 = vadd.f32 %v767, %v863
    %v865 = vpop.f32.mrb[0].mxu0
    %866 = vmatprep.mubr.bf16.mxu0 %v468
    %867 = vmatmul.mubr.bf16.gmra.mrb[0].mxu0 %v467
    %v868 = vpop.f32.mrb[0].mxu0
    %v869 = vadd.f32 %v772, %v868
    %v870 = vpop.f32.mrb[0].mxu0
    %v871 = vpop.f32.mrb[0].mxu0
    %v872 = vadd.f32 %v775, %v871
    %v873 = vpop.f32.mrb[0].mxu0
    %874 = vmatprep.mubr.bf16.mxu0 %v472
    %875 = vmatmul.mubr.bf16.gmra.mrb[0].mxu0 %v471
    %v876 = vpop.f32.mrb[0].mxu0
    %v877 = vadd.f32 %v780, %v876
    %v878 = vpop.f32.mrb[0].mxu0
    %v879 = vpop.f32.mrb[0].mxu0
    %v880 = vadd.f32 %v783, %v879
    %v881 = vpop.f32.mrb[0].mxu0
    %882 = vmatprep.mubr.bf16.mxu0 %v476
    %883 = vmatmul.mubr.bf16.gmra.mrb[0].mxu0 %v475
    %v884 = vpop.f32.mrb[0].mxu0
    %v885 = vadd.f32 %v788, %v884
    %v886 = vpop.f32.mrb[0].mxu0
    %v887 = vpop.f32.mrb[0].mxu0
    %v888 = vadd.f32 %v791, %v887
    %v889 = vpop.f32.mrb[0].mxu0
    %890 = vmatprep.mubr.bf16.mxu0 %v480
    %891 = vmatmul.mubr.bf16.gmra.mrb[0].mxu0 %v479
    %v892 = vpop.f32.mrb[0].mxu0
    %v893 = vadd.f32 %v796, %v892
    %v894 = vpop.f32.mrb[0].mxu0
    %v895 = vpop.f32.mrb[0].mxu0
    %v896 = vadd.f32 %v799, %v895
    %v897 = vpop.f32.mrb[0].mxu0
    %898 = vdwg.mxu0
    %v899 = vmax.f32 %v837, 0.0
    %v900 = vmax.f32 %v840, 0.0
    %v901 = vmax.f32 %v845, 0.0
    %v902 = vmax.f32 %v848, 0.0
    %v903 = vmax.f32 %v853, 0.0
    %v904 = vmax.f32 %v856, 0.0
    %v905 = vmax.f32 %v861, 0.0
    %v906 = vmax.f32 %v864, 0.0
    %v907 = vmax.f32 %v869, 0.0
    %v908 = vmax.f32 %v872, 0.0
    %v909 = vmax.f32 %v877, 0.0
    %v910 = vmax.f32 %v880, 0.0
    %v911 = vmax.f32 %v885, 0.0
    %v912 = vmax.f32 %v888, 0.0
    %v913 = vmax.f32 %v893, 0.0
    %v914 = vmax.f32 %v896, 0.0
    %915 = vst [vmem:[#allocation7] sm:$0xff] %v899
    %916 = vst [vmem:[#allocation7 + $0x8] sm:$0xff] %v900
    %917 = vst [vmem:[#allocation7 + $0x10] sm:$0xff] %v901
    %918 = vst [vmem:[#allocation7 + $0x18] sm:$0xff] %v902
    %919 = vst [vmem:[#allocation7 + $0x20] sm:$0xff] %v903
    %920 = vst [vmem:[#allocation7 + $0x28] sm:$0xff] %v904
    %921 = vst [vmem:[#allocation7 + $0x30] sm:$0xff] %v905
    %922 = vst [vmem:[#allocation7 + $0x38] sm:$0xff] %v906
    %923 = vst [vmem:[#allocation7 + $0x40] sm:$0xff] %v907
    %924 = vst [vmem:[#allocation7 + $0x48] sm:$0xff] %v908
    %925 = vst [vmem:[#allocation7 + $0x50] sm:$0xff] %v909
    %926 = vst [vmem:[#allocation7 + $0x58] sm:$0xff] %v910
    %927 = vst [vmem:[#allocation7 + $0x60] sm:$0xff] %v911
    %928 = vst [vmem:[#allocation7 + $0x68] sm:$0xff] %v912
    %929 = vst [vmem:[#allocation7 + $0x70] sm:$0xff] %v913
    %930 = vst [vmem:[#allocation7 + $0x78] sm:$0xff] %v914
    // Predicated region
    $region26: #{tpu_custom_call.1} parent=1 // pred_check
      _
    $region27: #{tpu_custom_call.1} parent=1 // pred_check_branch
      %932 = sbr.rel (0) target = $region29
    $region28: #{tpu_custom_call.1} parent=1 // pred_region
      %s934 = ssub.s32 2048, 2048
      %935 = vsyncadd [#allocation4], %s934
      %s936 = sshll.u32 [#allocation7], 4
      %s937 = int_to_ptr.vmem [resolvable:$true] %s936
      %942 = dma.vmem_to_hbm [thread:$0]  %s937, 2048, %s4, [#allocation4], 128, 128, 8
    $region29: #{tpu_custom_call.1} parent=1 // pred_fallthru
      _
    // Predicated region
    $region30: #{tpu_custom_call.1} parent=1 // pred_check
      _
    $region31: #{tpu_custom_call.1} parent=1 // pred_check_branch
      %944 = sbr.rel (0) target = $region33
    $region32: #{tpu_custom_call.1} parent=1 // pred_region
      %945 = dma.done [#allocation4], 2048
    $region33: #{tpu_custom_call.1} parent=1 // pred_fallthru
      _
    %946 = vsyncpa [#allocation3], 1
    %947 = vsyncpa [#allocation6], 1
    %948 = vsyncpa [#allocation4], 1

</llo_original>
